<compile_context>
chip_gen: v5e
topology: v5e:2x2
jax: 0.10.0
libtpu: 0.0.40
codegen_flags: <defaults>
</compile_context>

<pallas_src>
import functools

import jax
import jax.numpy as jnp
from jax.experimental import pallas as pl
from jax.experimental.pallas import tpu as pltpu


def _round_up(n, m):
    return ((n + m - 1) // m) * m


def mlp_kernel(x_ref, w1_ref, w2_ref, b2_ref, o_ref):
    # x_ref : (d_in + 1, TB)  -- last row is ones (folded bias), batch on lanes.
    # w1_ref: (hidden, d_in + 1) -- last column is b1.
    # w2_ref: (d_out, hidden), b2_ref: (d_out, 1).
    h = jnp.dot(w1_ref[...], x_ref[...], preferred_element_type=jnp.float32)
    h = jnp.maximum(h, 0.0)                       # ReLU only; bias already in the matmul
    y = jnp.dot(w2_ref[...], h, preferred_element_type=jnp.float32)
    o_ref[...] = (y + b2_ref[...]).astype(o_ref.dtype)


@functools.partial(jax.jit, static_argnames=("tile_b", "use_pallas"))
def neural_network_forward(x, w1, b1, w2, b2, *, tile_b=None, use_pallas=None):
    """Forward of Linear(d_in, H) -> ReLU -> Linear(H, d_out).

    x:  (B, d_in)
    w1: (d_in, H),  b1: (H,)      (torch layer0.weight.T / layer0.bias)
    w2: (H, d_out), b2: (d_out,)  (torch layer2.weight.T / layer2.bias)
    Returns (B, d_out).
    """
    B, d_in = x.shape
    hidden = w1.shape[1]
    d_out = w2.shape[1]

    # Small-batch fast path: pallas_call fixed costs + the relayout pass dominate below
    # a few thousand rows; a single fused XLA matmul is faster and exact.
    if use_pallas is None:
        use_pallas = B >= 4096
    if not use_pallas:
        return jnp.maximum(x @ w1 + b1, 0.0) @ w2 + b2

    # Batch tile (lane dim): multiple of 128, capped at 32768 (keeps the f32 working set
    # ~14 MiB -- safe on v5e/v6e/v7x), and sized for >= 4 grid steps at large B so v7x's
    # two TensorCores both get work on the "parallel" axis.
    if tile_b is None:
        tile_b = min(32768, max(128, _round_up(pl.cdiv(B, 4), 128)))

    # One relayout pass: feature-major transpose + ones row for the folded b1.
    x_aug = jnp.concatenate([x.T, jnp.ones((1, B), x.dtype)], axis=0)   # (d_in+1, B)
    w1_aug = jnp.concatenate([w1.T, b1.reshape(hidden, 1)], axis=1)     # (hidden, d_in+1)
    w2_t = w2.T                                                         # (d_out, hidden)
    b2_c = b2.reshape(d_out, 1)

    grid = (pl.cdiv(B, tile_b),)   # ragged last block handled by Pallas (masked writes)

    # Per-tile VMEM: x & out tiles (8 sublanes each, double-buffered) + (hidden, TB) f32
    # intermediate + slack.  Clamp into [32 MiB, 64 MiB] so it is valid on every gen.
    vmem_bytes = 4 * tile_b * (2 * 8 + 2 * 8 + hidden) + (4 << 20)
    vmem_limit = int(min(64 * 1024 * 1024, max(32 * 1024 * 1024, vmem_bytes)))

    flops = 2 * B * ((d_in + 1) * hidden + hidden * d_out)
    bytes_accessed = 4 * (B * (d_in + 1) + B * d_out
                          + hidden * (d_in + 1) + hidden * d_out + d_out)

    y_t = pl.pallas_call(
        mlp_kernel,
        out_shape=jax.ShapeDtypeStruct((d_out, B), x.dtype),
        grid_spec=pltpu.PrefetchScalarGridSpec(
            num_scalar_prefetch=0,
            grid=grid,
            in_specs=[
                pl.BlockSpec((d_in + 1, tile_b), lambda i: (0, i)),   # x tile, lane=batch
                pl.BlockSpec((hidden, d_in + 1), lambda i: (0, 0)),   # resident W1^T|b1
                pl.BlockSpec((d_out, hidden), lambda i: (0, 0)),      # resident W2^T
                pl.BlockSpec((d_out, 1), lambda i: (0, 0)),           # resident b2
            ],
            out_specs=pl.BlockSpec((d_out, tile_b), lambda i: (0, i)),
        ),
        compiler_params=pltpu.CompilerParams(
            dimension_semantics=("parallel",),   # shard batch tiles across TCs on v7x
            vmem_limit_bytes=vmem_limit,
        ),
        cost_estimate=pl.CostEstimate(
            flops=flops, transcendentals=0, bytes_accessed=bytes_accessed),
    )(x_aug, w1_aug, w2_t, b2_c)

    # (d_out, B) -> (B, d_out); for d_out == 1 this is a layout-trivial reshape.
    return y_t.T


def init_params(key, input_dim=5, hidden_dim=64, output_dim=1):
    """Deterministic init mimicking PyTorch nn.Linear default U[-1/sqrt(fan_in), +]."""
    k1, k2, k3, k4 = jax.random.split(key, 4)
    bound1 = 1.0 / jnp.sqrt(input_dim)
    bound2 = 1.0 / jnp.sqrt(hidden_dim)
    w1 = jax.random.uniform(k1, (input_dim, hidden_dim), jnp.float32, -bound1, bound1)
    b1 = jax.random.uniform(k2, (hidden_dim,), jnp.float32, -bound1, bound1)
    w2 = jax.random.uniform(k3, (hidden_dim, output_dim), jnp.float32, -bound2, bound2)
    b2 = jax.random.uniform(k4, (output_dim,), jnp.float32, -bound2, bound2)
    return w1, b1, w2, b2


if __name__ == "__main__":
    key = jax.random.PRNGKey(0)
    kx, kp, kx2 = jax.random.split(key, 3)

    batch, input_dim, hidden_dim, output_dim = 8, 5, 64, 1
    x = jax.random.normal(kx, (batch, input_dim), dtype=jnp.float32)
    w1, b1, w2, b2 = init_params(kp, input_dim, hidden_dim, output_dim)
    # NOTE: nn.Flatten is declared in the torch module but unused in forward(); x is 2-D.

    # Small batch, forced through the Pallas path to exercise the kernel.
    out = neural_network_forward(x, w1, b1, w2, b2, use_pallas=True)
    out = jax.block_until_ready(out)
    ref = jnp.maximum(x @ w1 + b1, 0.0) @ w2 + b2
    assert out.shape == (batch, output_dim)
    assert jnp.allclose(out, ref, atol=1e-5, rtol=1e-5)

    # Larger ragged batch: multi-step grid + partial last block through the Pallas path.
    batch2 = 1000
    x2 = jax.random.normal(kx2, (batch2, input_dim), dtype=jnp.float32)
    out2 = jax.block_until_ready(
        neural_network_forward(x2, w1, b1, w2, b2, use_pallas=True))
    ref2 = jnp.maximum(x2 @ w1 + b1, 0.0) @ w2 + b2
    assert out2.shape == (batch2, output_dim)
    assert jnp.allclose(out2, ref2, atol=1e-5, rtol=1e-5)

    print("KERNEL_OK")
</pallas_src>

<mosaic_0001>
module attributes {stable_mosaic.version = 11 : i64} {
  func.func @mlp_kernel(%arg0: i32, %arg1: memref<6x128xf32, #tpu.memory_space<vmem>>, %arg2: memref<64x6xf32, #tpu.memory_space<vmem>>, %arg3: memref<1x64xf32, #tpu.memory_space<vmem>>, %arg4: memref<1x1xf32, #tpu.memory_space<vmem>>, %arg5: memref<1x128xf32, #tpu.memory_space<vmem>>) attributes {dimension_semantics = [#tpu.dimension_semantics<parallel>], iteration_bounds = array<i64: 1>, scalar_prefetch = 0 : i64, scratch_operands = 0 : i64, tpu.core_type = #tpu.core_type<tc>, window_params = [{transform_indices = @transform_0, window_bounds = array<i64: 6, 128>}, {pipeline_mode = #tpu.pipeline_mode<synchronous>, transform_indices = @transform_1, window_bounds = array<i64: 64, 6>}, {pipeline_mode = #tpu.pipeline_mode<synchronous>, transform_indices = @transform_2, window_bounds = array<i64: 1, 64>}, {pipeline_mode = #tpu.pipeline_mode<synchronous>, transform_indices = @transform_3, window_bounds = array<i64: 1, 1>}, {transform_indices = @transform_4, window_bounds = array<i64: 1, 128>}]} {
    %c0 = arith.constant 0 : index
    %c0_0 = arith.constant 0 : index
    %0 = vector.load %arg2[%c0, %c0_0] : memref<64x6xf32, #tpu.memory_space<vmem>>, vector<64x6xf32>
    %c0_1 = arith.constant 0 : index
    %c0_2 = arith.constant 0 : index
    %1 = vector.load %arg1[%c0_1, %c0_2] : memref<6x128xf32, #tpu.memory_space<vmem>>, vector<6x128xf32>
    %cst = arith.constant dense<0.000000e+00> : vector<64x128xf32>
    %2 = tpu.matmul %0, %1, %cst {dimension_numbers = #tpu.dot_dimension_numbers<[1], [0], [0], [1], [0, 0, 1, 1], [], []>} : vector<64x6xf32>, vector<6x128xf32>, vector<64x128xf32> -> vector<64x128xf32>
    %cst_3 = arith.constant 0.000000e+00 : f32
    %3 = vector.broadcast %cst_3 : f32 to vector<64x128xf32>
    %4 = arith.maximumf %2, %3 : vector<64x128xf32>
    %c0_4 = arith.constant 0 : index
    %c0_5 = arith.constant 0 : index
    %5 = vector.load %arg3[%c0_4, %c0_5] : memref<1x64xf32, #tpu.memory_space<vmem>>, vector<1x64xf32>
    %cst_6 = arith.constant dense<0.000000e+00> : vector<1x128xf32>
    %6 = tpu.matmul %5, %4, %cst_6 {dimension_numbers = #tpu.dot_dimension_numbers<[1], [0], [0], [1], [0, 0, 1, 1], [], []>} : vector<1x64xf32>, vector<64x128xf32>, vector<1x128xf32> -> vector<1x128xf32>
    %c0_7 = arith.constant 0 : index
    %c0_8 = arith.constant 0 : index
    %7 = vector.load %arg4[%c0_7, %c0_8] : memref<1x1xf32, #tpu.memory_space<vmem>>, vector<1x1xf32>
    %8 = vector.broadcast %7 : vector<1x1xf32> to vector<1x128xf32>
    %9 = arith.addf %6, %8 : vector<1x128xf32>
    %c0_9 = arith.constant 0 : index
    %c0_10 = arith.constant 0 : index
    %10 = vector.load %arg5[%c0_9, %c0_10] : memref<1x128xf32, #tpu.memory_space<vmem>>, vector<1x128xf32>
    tpu.vector_store %arg5[%c0_9, %c0_10], %9 {strides = array<i32>} : memref<1x128xf32, #tpu.memory_space<vmem>>, vector<1x128xf32>,
    return
  }
  func.func @transform_0(%arg0: i32) -> (i32, i32) {
    %c0_i32 = arith.constant 0 : i32
    %c0_i32_0 = arith.constant 0 : i32
    return %c0_i32, %arg0 : i32, i32
  }
  func.func @transform_1(%arg0: i32) -> (i32, i32) {
    %c0_i32 = arith.constant 0 : i32
    %c0_i32_0 = arith.constant 0 : i32
    %c0_i32_1 = arith.constant 0 : i32
    return %c0_i32, %c0_i32_0 : i32, i32
  }
  func.func @transform_2(%arg0: i32) -> (i32, i32) {
    %c0_i32 = arith.constant 0 : i32
    %c0_i32_0 = arith.constant 0 : i32
    %c0_i32_1 = arith.constant 0 : i32
    return %c0_i32, %c0_i32_0 : i32, i32
  }
  func.func @transform_3(%arg0: i32) -> (i32, i32) {
    %c0_i32 = arith.constant 0 : i32
    %c0_i32_0 = arith.constant 0 : i32
    %c0_i32_1 = arith.constant 0 : i32
    return %c0_i32, %c0_i32_0 : i32, i32
  }
  func.func @transform_4(%arg0: i32) -> (i32, i32) {
    %c0_i32 = arith.constant 0 : i32
    %c0_i32_0 = arith.constant 0 : i32
    return %c0_i32, %arg0 : i32, i32
  }
}

</mosaic_0001>

<llo_original>
// kernel: neural_network_forward.1
$region0: #{neural_network_forward.1}
  #allocation0 [shape = 'u32[]', space=smem, size = 0x4, offset = 0x4, fixed_abs, tag = 'smem constant byte address 0x4 - core index']
  #allocation1 [shape = 'u32[72,128]{1,0:T(1,128)}', space=vmem, size = 0x9000, scoped, tag = 'internal scratch']
  #allocation2 [shape = 'f32[1,1]{1,0:T(1,128)S(1)}', space=vmem, size = 0x200, scoped, tag = 'scoped memory for neural_network_forward.1']
  %s0 = inlined_call_operand.vmem [shape: f32[6,8], index: 0, kind: input, shape index: {}]
  %s1 = inlined_call_operand.vmem [shape: f32[64,6], index: 1, kind: input, shape index: {}]
  %s2 = inlined_call_operand.vmem [shape: f32[1,64], index: 2, kind: input, shape index: {}]
  %s3 = inlined_call_operand.<no memory space> [shape: f32[1,1], index: 3, kind: input, shape index: {}]
  %s4 = inlined_call_operand.hbm [shape: f32[1,8], index: 4, kind: output, shape index: {}]
  %s5 = sld [smem:[#allocation0]]
  $region26: #{neural_network_forward.1} parent=0
    _
  %s7 = ssub.s32 1, %s5
  %s8 = scalar_select 0, %s7, %s5
  %v9 = vstv %s3
  %10 = vst [vmem:[#allocation2] sm:$0x1] %v9
  $region1: #{neural_network_forward.1} parent=0
    #allocation3 [shape = 'u8[512]{0}', space=vmem, size = 0x400, scoped, tag = 'output window, operand 0, single buffered']
    #allocation4 [shape = 's32[1]{0}', space=sflag, size = 0x4, scoped, tag = 'scoped memory for neural_network_forward.1']
    %11 = vsyncpa [#allocation4], 0
    // Predicated region
    $region2: #{neural_network_forward.1} parent=1 // pred_check
      _
    $region3: #{neural_network_forward.1} parent=1 // pred_check_branch
      %13 = sbr.rel (0) target = $region5
    $region4: #{neural_network_forward.1} parent=1 // pred_region
      _
    $region5: #{neural_network_forward.1} parent=1 // pred_fallthru
      _
    // Predicated region
    $region6: #{neural_network_forward.1} parent=1 // pred_check
      _
    $region7: #{neural_network_forward.1} parent=1 // pred_check_branch
      %15 = sbr.rel (0) target = $region9
    $region8: #{neural_network_forward.1} parent=1 // pred_region
      _
    $region9: #{neural_network_forward.1} parent=1 // pred_fallthru
      _
    // Predicated region
    $region10: #{neural_network_forward.1} parent=1 // pred_check
      _
    $region11: #{neural_network_forward.1} parent=1 // pred_check_branch
      %17 = sbr.rel (0) target = $region13
    $region12: #{neural_network_forward.1} parent=1 // pred_region
      _
    $region13: #{neural_network_forward.1} parent=1 // pred_fallthru
      _
    // Predicated region
    $region14: #{neural_network_forward.1} parent=1 // pred_check
      _
    $region15: #{neural_network_forward.1} parent=1 // pred_check_branch
      %19 = sbr.rel (0) target = $region17
    $region16: #{neural_network_forward.1} parent=1 // pred_region
      _
    $region17: #{neural_network_forward.1} parent=1 // pred_fallthru
      _
    %v20 = vld [vmem:[%s1] sm:$0xff]
    %v21 = vld [vmem:[%s1 + $0x8] sm:$0xff]
    %v22 = vld [vmem:[%s1 + $0x10] sm:$0xff]
    %v23 = vld [vmem:[%s1 + $0x18] sm:$0xff]
    %v24 = vld [vmem:[%s1 + $0x20] sm:$0xff]
    %v25 = vld [vmem:[%s1 + $0x28] sm:$0xff]
    %v26 = vld [vmem:[%s1 + $0x30] sm:$0xff]
    %v27 = vld [vmem:[%s1 + $0x38] sm:$0xff]
    %v28 = vld [vmem:[%s0] sm:$0x3f]
    %vm29 = vcmask 48128
    %v31 = vsel %vm29, %v20, 0
    %v34 = vsel %vm29, %v21, 0
    %v37 = vsel %vm29, %v22, 0
    %v40 = vsel %vm29, %v23, 0
    %v43 = vsel %vm29, %v24, 0
    %v46 = vsel %vm29, %v25, 0
    %v49 = vsel %vm29, %v26, 0
    %v52 = vsel %vm29, %v27, 0
    %vm54 = vcmask 1045504
    %v56 = vsel %vm54, %v28, 0
    %58 = vmatpush.msra.mxu0 0.0
    %59 = vmatpush.msra.mxu0 0.0
    %60 = vmatpush.msra.mxu0 0.0
    %61 = vmatpush.msra.mxu0 0.0
    %62 = vmatpush.msra.mxu0 0.0
    %63 = vmatpush.msra.mxu0 0.0
    %64 = vmatpush.msra.mxu0 0.0
    %65 = vmatpush.msra.mxu0 0.0
    %66 = vmatpush.msra.mxu0 0.0
    %67 = vmatpush.msra.mxu0 0.0
    %68 = vmatpush.msra.mxu0 0.0
    %69 = vmatpush.msra.mxu0 0.0
    %70 = vmatpush.msra.mxu0 0.0
    %71 = vmatpush.msra.mxu0 0.0
    %72 = vmatpush.msra.mxu0 0.0
    %73 = vmatpush.msra.mxu0 %v56
    %74 = vmatmul.f32.gmra.mxu0 %v31
    %v75 = vpop.f32.mrf.mxu0
    %v76 = vadd.f32 0.0, %v75
    %77 = vmatmul.f32.gmra.mxu0 %v34
    %v78 = vpop.f32.mrf.mxu0
    %v79 = vadd.f32 0.0, %v78
    %80 = vmatmul.f32.gmra.mxu0 %v37
    %v81 = vpop.f32.mrf.mxu0
    %v82 = vadd.f32 0.0, %v81
    %83 = vmatmul.f32.gmra.mxu0 %v40
    %v84 = vpop.f32.mrf.mxu0
    %v85 = vadd.f32 0.0, %v84
    %86 = vmatmul.f32.gmra.mxu0 %v43
    %v87 = vpop.f32.mrf.mxu0
    %v88 = vadd.f32 0.0, %v87
    %89 = vmatmul.f32.gmra.mxu0 %v46
    %v90 = vpop.f32.mrf.mxu0
    %v91 = vadd.f32 0.0, %v90
    %92 = vmatmul.f32.gmra.mxu0 %v49
    %v93 = vpop.f32.mrf.mxu0
    %v94 = vadd.f32 0.0, %v93
    %95 = vmatmul.f32.gmra.mxu0 %v52
    %v96 = vpop.f32.mrf.mxu0
    %v97 = vadd.f32 0.0, %v96
    %98 = vdwg.mxu0
    %v99 = vmax.f32 %v76, 0.0
    %v100 = vmax.f32 %v79, 0.0
    %v101 = vmax.f32 %v82, 0.0
    %v102 = vmax.f32 %v85, 0.0
    %v103 = vmax.f32 %v88, 0.0
    %v104 = vmax.f32 %v91, 0.0
    %v105 = vmax.f32 %v94, 0.0
    %v106 = vmax.f32 %v97, 0.0
    %v107 = vld [vmem:[%s2] sm:$0x1]
    %v108 = vld [vmem:[#allocation2] sm:$0x1]
    %110 = vset.pattern.permute.xlu0 0
    %111 = vperm.xlu0 %110, %v108
    %v112 = vpop.permute.xlu0 %111
    %v114 = vperm.slane %v112, 0
    %vm115 = vcmask 523264
    %v117 = vsel %vm115, %v107, 0
    %119 = vmatpush.msra.mxu0 0.0
    %120 = vmatpush.msra.mxu0 0.0
    %121 = vmatpush.msra.mxu0 0.0
    %122 = vmatpush.msra.mxu0 0.0
    %123 = vmatpush.msra.mxu0 0.0
    %124 = vmatpush.msra.mxu0 0.0
    %125 = vmatpush.msra.mxu0 0.0
    %126 = vmatpush.msra.mxu0 0.0
    %127 = vmatpush.msra.mxu0 %v106
    %128 = vmatpush.msra.mxu0 %v105
    %129 = vmatpush.msra.mxu0 %v104
    %130 = vmatpush.msra.mxu0 %v103
    %131 = vmatpush.msra.mxu0 %v102
    %132 = vmatpush.msra.mxu0 %v101
    %133 = vmatpush.msra.mxu0 %v100
    %134 = vmatpush.msra.mxu0 %v99
    %135 = vmatmul.f32.gmra.mxu0 %v117
    %v136 = vpop.f32.mrf.mxu0
    %v137 = vadd.f32 %v114, %v136
    %138 = vdwg.mxu0
    %139 = vst [vmem:[#allocation3] sm:$0x1] %v137
    // Predicated region
    $region18: #{neural_network_forward.1} parent=1 // pred_check
      _
    $region19: #{neural_network_forward.1} parent=1 // pred_check_branch
      %141 = sbr.rel (0) target = $region21
    $region20: #{neural_network_forward.1} parent=1 // pred_region
      %143 = vsyncadd [#allocation4], 0
      %s145 = sshll.u32 [#allocation3], 4
      %s146 = int_to_ptr.vmem [resolvable:$true] %s145
      %s147 = sshll.u32 %s4, 4
      %s148 = int_to_ptr.hbm [resolvable:$true] %s147
      %150 = dma.vmem_to_hbm [thread:$0]  %s146, 16, %s148, [#allocation4]
    $region21: #{neural_network_forward.1} parent=1 // pred_fallthru
      _
    // Predicated region
    $region22: #{neural_network_forward.1} parent=1 // pred_check
      _
    $region23: #{neural_network_forward.1} parent=1 // pred_check_branch
      %152 = sbr.rel (0) target = $region25
    $region24: #{neural_network_forward.1} parent=1 // pred_region
      %154 = dma.done [#allocation4], 16
    $region25: #{neural_network_forward.1} parent=1 // pred_fallthru
      _
    %155 = vsyncpa [#allocation4], 1

</llo_original>
